<compile_context>
chip_gen: v6e
topology: v6e:2x2x1
jax: 0.10.0
libtpu: 0.0.40
codegen_flags: <defaults>
</compile_context>

<pallas_src>
import functools

import jax
import jax.numpy as jnp
from jax.experimental import pallas as pl
from jax.experimental.pallas import tpu as pltpu


def _round_up(n, m):
    return ((n + m - 1) // m) * m


def _pick_spatial_tile(s, cap=512):
    """Largest divisor of s that is a multiple of 8 and <= cap (fallback: s)."""
    for t in range(min(s, cap), 0, -1):
        if s % t == 0 and t % 8 == 0:
            return t
    return s


# ----------------------------- fused Pallas kernel ------------------------------

def _fused_kernel(x_ref, wbb_ref, bbb_ref, wh_ref, bh_ref, o_ref, acc_ref, *, inv_s):
    # x_ref:   (TB, TS, C)  bf16 image block (channels-last, spatial flattened)
    # wbb_ref: (C, Dp)      pointwise-conv weight (f32, D padded to 128)
    # bbb_ref: (1, Dp)      conv bias
    # wh_ref:  (Dp, Op)     concatenated [cancer | aux...] head weights (padded)
    # bh_ref:  (1, Op)      concatenated head biases (padded)
    # o_ref:   (TB, Op)     concatenated logits (lane-dense, padded)
    # acc_ref: (TB, Dp)     f32 spatial-sum accumulator (VMEM scratch)
    j = pl.program_id(1)

    @pl.when(j == 0)
    def _init():
        acc_ref[...] = jnp.zeros_like(acc_ref)

    x = x_ref[...].astype(jnp.float32)          # (TB, TS, C), f32 math everywhere
    wbb = wbb_ref[...]                          # (C, Dp)
    c_dim = x.shape[-1]

    # 1x1 conv over channels as C broadcast multiply-accumulates on the VPU
    # (K = C is tiny; keeps the MXU free and avoids a K-padded systolic pass).
    y = x[:, :, 0:1] * wbb[0][None, None, :]
    for c in range(1, c_dim):                   # static unrolled loop, C is small
        y = y + x[:, :, c:c + 1] * wbb[c][None, None, :]
    y = y + bbb_ref[...][None]                  # bias, broadcast (1,1,Dp)
    y = jnp.maximum(y, 0.0)                     # ReLU

    # NOTE: ReLU sits between conv and pool, so the pool can NOT be hoisted
    # before the conv (mean(ReLU(xW+b)) != ReLU(mean(x)W+b)).
    acc_ref[...] += jnp.sum(y, axis=1)          # partial spatial sum

    @pl.when(j == pl.num_programs(1) - 1)
    def _finish():
        feats = acc_ref[...] * inv_s            # global average pool -> (TB, Dp)
        # fused heads: feats @ [W_cancer | W_aux...] + b ; single lane-dense store
        o_ref[...] = (
            jnp.dot(feats, wh_ref[...], preferred_element_type=jnp.float32)
            + bh_ref[...]
        )


# ------------------------------ JAX wrapper --------------------------------

def run_fused(x_bsc, w_bb, b_bb, w_heads, b_heads, *, tile_b=None, tile_s=None):
    """x_bsc: (B, S, C) bf16. Weights already zero-padded to Dp/Op multiples of 128.
    Returns padded logits (B, Op) f32."""
    B, S, C = x_bsc.shape
    Dp = w_bb.shape[1]
    Op = w_heads.shape[1]

    if tile_b is None:
        tile_b = B if B <= 8 else 8
    assert B % tile_b == 0, "batch must be divisible by tile_b"
    if tile_s is None:
        tile_s = _pick_spatial_tile(S)
    assert S % tile_s == 0 and tile_s % 8 == 0, "spatial tile must divide S, mult of 8"

    n_b = B // tile_b
    n_s = S // tile_s

    kernel = functools.partial(_fused_kernel, inv_s=1.0 / float(S))

    flops = 2 * B * S * C * Dp + 2 * B * S * Dp + 2 * B * Dp * Op
    bytes_accessed = int(
        x_bsc.size * x_bsc.dtype.itemsize
        + (w_bb.size + b_bb.size + w_heads.size + b_heads.size) * 4
        + B * Op * 4
    )

    return pl.pallas_call(
        kernel,
        out_shape=jax.ShapeDtypeStruct((B, Op), jnp.float32),
        grid_spec=pltpu.PrefetchScalarGridSpec(
            num_scalar_prefetch=0,
            grid=(n_b, n_s),                      # reduction (spatial) axis last
            in_specs=[
                pl.BlockSpec((tile_b, tile_s, C), lambda i, j: (i, j, 0)),
                pl.BlockSpec((C, Dp), lambda i, j: (0, 0)),
                pl.BlockSpec((1, Dp), lambda i, j: (0, 0)),
                pl.BlockSpec((Dp, Op), lambda i, j: (0, 0)),
                pl.BlockSpec((1, Op), lambda i, j: (0, 0)),
            ],
            out_specs=pl.BlockSpec((tile_b, Op), lambda i, j: (i, 0)),
            scratch_shapes=[pltpu.VMEM((tile_b, Dp), jnp.float32)],
        ),
        compiler_params=pltpu.CompilerParams(
            dimension_semantics=("parallel", "arbitrary"),
            vmem_limit_bytes=32 * 1024 * 1024,   # safe on v5e/v6e (128 MiB) and v7x (64 MiB)
        ),
        cost_estimate=pl.CostEstimate(
            flops=flops, transcendentals=0, bytes_accessed=bytes_accessed),
    )(x_bsc, w_bb, b_bb, w_heads, b_heads)


def breast_cancer_model_forward(x_nchw, params, aux_classes, *, tile_s=None):
    """Mirrors BreastCancerModel.forward: returns (cancer, [aux...])."""
    B, C, H, W = x_nchw.shape
    S = H * W

    # NCHW (PyTorch) -> channels-last, spatial flattened; bf16 on the image path.
    x = jnp.transpose(x_nchw, (0, 2, 3, 1)).reshape(B, S, C).astype(jnp.bfloat16)

    w_bb, b_bb = params["w_bb"], params["b_bb"]          # (C, D), (1, D)
    w_h, b_h = params["w_heads"], params["b_heads"]      # (D, O), (1, O)
    D, O = w_h.shape
    Dp, Op = _round_up(D, 128), _round_up(O, 128)

    # Zero-pad feature/output dims to 128-lane multiples (lane-dense stores).
    # Padded feature dims: ReLU(0*w + 0) = 0; padded head rows/cols are 0 -> no effect.
    w_bb_p = jnp.zeros((C, Dp), jnp.float32).at[:, :D].set(w_bb.astype(jnp.float32))
    b_bb_p = jnp.zeros((1, Dp), jnp.float32).at[:, :D].set(b_bb.astype(jnp.float32))
    w_h_p = jnp.zeros((Dp, Op), jnp.float32).at[:D, :O].set(w_h.astype(jnp.float32))
    b_h_p = jnp.zeros((1, Op), jnp.float32).at[:, :O].set(b_h.astype(jnp.float32))

    logits_p = run_fused(x, w_bb_p, b_bb_p, w_h_p, b_h_p, tile_s=tile_s)  # (B, Op)
    logits = logits_p[:, :O]

    # split fused head output: column 0 is the cancer head, the rest are aux heads.
    # torch .squeeze() squeezes ALL size-1 dims; jnp.squeeze matches that.
    cancer = jnp.squeeze(logits[:, 0:1])
    aux = []
    off = 1
    for n in aux_classes:
        aux.append(jnp.squeeze(logits[:, off:off + n]))
        off += n
    return cancer, aux


# --------------------------------- main -------------------------------------

if __name__ == "__main__":
    # small shapes consistent with the module's forward (image -> features -> heads)
    B, C, H, W = 2, 3, 16, 16
    backbone_dim = 32
    aux_classes = (4, 3)

    key = jax.random.PRNGKey(0)
    k_x, k_wbb, k_bbb, k_wc, k_bc, k_wa = jax.random.split(key, 6)

    x = jax.random.normal(k_x, (B, C, H, W), dtype=jnp.float32)   # NCHW like PyTorch

    # deterministic synthetic parameters (shapes follow the module's __init__)
    w_bb = 0.1 * jax.random.normal(k_wbb, (C, backbone_dim), dtype=jnp.float32)
    b_bb = 0.1 * jax.random.normal(k_bbb, (1, backbone_dim), dtype=jnp.float32)

    # nn_cancer: Linear(backbone_dim, 1); nn_aux[i]: Linear(backbone_dim, aux_classes[i])
    w_cancer = 0.1 * jax.random.normal(k_wc, (backbone_dim, 1), dtype=jnp.float32)
    b_cancer = 0.1 * jax.random.normal(k_bc, (1, 1), dtype=jnp.float32)
    aux_keys = jax.random.split(k_wa, 2 * len(aux_classes))
    w_aux = [0.1 * jax.random.normal(aux_keys[2 * i], (backbone_dim, n), dtype=jnp.float32)
             for i, n in enumerate(aux_classes)]
    b_aux = [0.1 * jax.random.normal(aux_keys[2 * i + 1], (1, n), dtype=jnp.float32)
             for i, n in enumerate(aux_classes)]

    params = {
        "w_bb": w_bb,
        "b_bb": b_bb,
        "w_heads": jnp.concatenate([w_cancer] + w_aux, axis=1),   # (D, 1+sum(aux))
        "b_heads": jnp.concatenate([b_cancer] + b_aux, axis=1),   # (1, 1+sum(aux))
    }

    # tile_s=128 -> two spatial reduction steps: exercises the pl.when-gated
    # accumulator and the input pipeline even at this toy size.
    cancer, aux = breast_cancer_model_forward(x, params, aux_classes, tile_s=128)
    cancer = jax.block_until_ready(cancer)
    aux = [jax.block_until_ready(a) for a in aux]

    assert cancer.shape == (B,)
    assert all(a.shape == (B, n) for a, n in zip(aux, aux_classes))

    # pure-JAX reference (same bf16-rounded image, f32 math)
    xr = jnp.transpose(x, (0, 2, 3, 1)).reshape(B, H * W, C)
    xr = xr.astype(jnp.bfloat16).astype(jnp.float32)
    y_ref = jnp.maximum(
        jnp.einsum("bsc,cd->bsd", xr, w_bb, precision=jax.lax.Precision.HIGHEST)
        + b_bb[None], 0.0)
    feats_ref = jnp.mean(y_ref, axis=1)
    logits_ref = (jnp.dot(feats_ref, params["w_heads"],
                          precision=jax.lax.Precision.HIGHEST) + params["b_heads"])
    cancer_ref = jnp.squeeze(logits_ref[:, 0:1])
    assert jnp.allclose(cancer, cancer_ref, rtol=2e-2, atol=2e-2)
    off = 1
    for a, n in zip(aux, aux_classes):
        assert jnp.allclose(a, jnp.squeeze(logits_ref[:, off:off + n]),
                            rtol=2e-2, atol=2e-2)
        off += n

    print("KERNEL_OK")
</pallas_src>

<mosaic_0001>
module attributes {stable_mosaic.version = 11 : i64} {
  func.func @_fused_kernel(%arg0: i32, %arg1: i32, %arg2: memref<2x128x3xbf16, #tpu.memory_space<vmem>>, %arg3: memref<3x128xf32, #tpu.memory_space<vmem>>, %arg4: memref<1x128xf32, #tpu.memory_space<vmem>>, %arg5: memref<128x128xf32, #tpu.memory_space<vmem>>, %arg6: memref<1x128xf32, #tpu.memory_space<vmem>>, %arg7: memref<2x128xf32, #tpu.memory_space<vmem>>, %arg8: memref<2x128xf32, #tpu.memory_space<vmem>>) attributes {dimension_semantics = [#tpu.dimension_semantics<parallel>, #tpu.dimension_semantics<arbitrary>], iteration_bounds = array<i64: 1, 2>, scalar_prefetch = 0 : i64, scratch_operands = 1 : i64, tpu.core_type = #tpu.core_type<tc>, window_params = [{transform_indices = @transform_0, window_bounds = array<i64: 2, 128, 3>}, {pipeline_mode = #tpu.pipeline_mode<synchronous>, transform_indices = @transform_1, window_bounds = array<i64: 3, 128>}, {pipeline_mode = #tpu.pipeline_mode<synchronous>, transform_indices = @transform_2, window_bounds = array<i64: 1, 128>}, {pipeline_mode = #tpu.pipeline_mode<synchronous>, transform_indices = @transform_3, window_bounds = array<i64: 128, 128>}, {pipeline_mode = #tpu.pipeline_mode<synchronous>, transform_indices = @transform_4, window_bounds = array<i64: 1, 128>}, {transform_indices = @transform_5, window_bounds = array<i64: 2, 128>}]} {
    %c0_i32 = arith.constant 0 : i32
    %0 = arith.cmpi eq, %arg1, %c0_i32 : i32
    %1 = arith.extui %0 : i1 to i32
    %c0_i32_0 = arith.constant 0 : i32
    %2 = arith.cmpi ne, %1, %c0_i32_0 : i32
    scf.if %2 {
      %cst_13 = arith.constant 0.000000e+00 : f32
      %42 = vector.broadcast %cst_13 : f32 to vector<2x128xf32>
      %c0_14 = arith.constant 0 : index
      %c0_15 = arith.constant 0 : index
      %43 = vector.load %arg8[%c0_14, %c0_15] : memref<2x128xf32, #tpu.memory_space<vmem>>, vector<2x128xf32>
      tpu.vector_store %arg8[%c0_14, %c0_15], %42 {strides = array<i32>} : memref<2x128xf32, #tpu.memory_space<vmem>>, vector<2x128xf32>,
    } else {
    }
    %c0 = arith.constant 0 : index
    %c0_1 = arith.constant 0 : index
    %c0_2 = arith.constant 0 : index
    %3 = vector.load %arg2[%c0, %c0_1, %c0_2] : memref<2x128x3xbf16, #tpu.memory_space<vmem>>, vector<2x128x3xbf16>
    %4 = arith.extf %3 : vector<2x128x3xbf16> to vector<2x128x3xf32>
    %c0_3 = arith.constant 0 : index
    %c0_4 = arith.constant 0 : index
    %5 = vector.load %arg3[%c0_3, %c0_4] : memref<3x128xf32, #tpu.memory_space<vmem>>, vector<3x128xf32>
    %6 = vector.extract_strided_slice %4 {offsets = [0, 0, 0], sizes = [2, 128, 1], strides = [1, 1, 1]} : vector<2x128x3xf32> to vector<2x128x1xf32>
    %7 = vector.extract_strided_slice %5 {offsets = [0, 0], sizes = [1, 128], strides = [1, 1]} : vector<3x128xf32> to vector<1x128xf32>
    %8 = vector.shape_cast %7 : vector<1x128xf32> to vector<128xf32>
    %9 = vector.shape_cast %8 : vector<128xf32> to vector<1x1x128xf32>
    %10 = vector.broadcast %6 : vector<2x128x1xf32> to vector<2x128x128xf32>
    %11 = vector.broadcast %9 : vector<1x1x128xf32> to vector<2x128x128xf32>
    %12 = arith.mulf %10, %11 : vector<2x128x128xf32>
    %13 = vector.extract_strided_slice %4 {offsets = [0, 0, 1], sizes = [2, 128, 1], strides = [1, 1, 1]} : vector<2x128x3xf32> to vector<2x128x1xf32>
    %14 = vector.extract_strided_slice %5 {offsets = [1, 0], sizes = [1, 128], strides = [1, 1]} : vector<3x128xf32> to vector<1x128xf32>
    %15 = vector.shape_cast %14 : vector<1x128xf32> to vector<128xf32>
    %16 = vector.shape_cast %15 : vector<128xf32> to vector<1x1x128xf32>
    %17 = vector.broadcast %13 : vector<2x128x1xf32> to vector<2x128x128xf32>
    %18 = vector.broadcast %16 : vector<1x1x128xf32> to vector<2x128x128xf32>
    %19 = arith.mulf %17, %18 : vector<2x128x128xf32>
    %20 = arith.addf %12, %19 : vector<2x128x128xf32>
    %21 = vector.extract_strided_slice %4 {offsets = [0, 0, 2], sizes = [2, 128, 1], strides = [1, 1, 1]} : vector<2x128x3xf32> to vector<2x128x1xf32>
    %22 = vector.extract_strided_slice %5 {offsets = [2, 0], sizes = [1, 128], strides = [1, 1]} : vector<3x128xf32> to vector<1x128xf32>
    %23 = vector.shape_cast %22 : vector<1x128xf32> to vector<128xf32>
    %24 = vector.shape_cast %23 : vector<128xf32> to vector<1x1x128xf32>
    %25 = vector.broadcast %21 : vector<2x128x1xf32> to vector<2x128x128xf32>
    %26 = vector.broadcast %24 : vector<1x1x128xf32> to vector<2x128x128xf32>
    %27 = arith.mulf %25, %26 : vector<2x128x128xf32>
    %28 = arith.addf %20, %27 : vector<2x128x128xf32>
    %c0_5 = arith.constant 0 : index
    %c0_6 = arith.constant 0 : index
    %29 = vector.load %arg4[%c0_5, %c0_6] : memref<1x128xf32, #tpu.memory_space<vmem>>, vector<1x128xf32>
    %30 = vector.shape_cast %29 : vector<1x128xf32> to vector<1x1x128xf32>
    %31 = vector.broadcast %30 : vector<1x1x128xf32> to vector<2x128x128xf32>
    %32 = arith.addf %28, %31 : vector<2x128x128xf32>
    %cst = arith.constant 0.000000e+00 : f32
    %33 = vector.broadcast %cst : f32 to vector<2x128x128xf32>
    %34 = arith.maximumf %32, %33 : vector<2x128x128xf32>
    %c0_7 = arith.constant 0 : index
    %c0_8 = arith.constant 0 : index
    %35 = vector.load %arg8[%c0_7, %c0_8] : memref<2x128xf32, #tpu.memory_space<vmem>>, vector<2x128xf32>
    %cst_9 = arith.constant dense<0.000000e+00> : vector<2x128xf32>
    %36 = vector.multi_reduction <add>, %34, %cst_9 [1] : vector<2x128x128xf32> to vector<2x128xf32>
    %37 = arith.addf %35, %36 : vector<2x128xf32>
    %c0_10 = arith.constant 0 : index
    %c0_11 = arith.constant 0 : index
    %38 = vector.load %arg8[%c0_10, %c0_11] : memref<2x128xf32, #tpu.memory_space<vmem>>, vector<2x128xf32>
    tpu.vector_store %arg8[%c0_10, %c0_11], %37 {strides = array<i32>} : memref<2x128xf32, #tpu.memory_space<vmem>>, vector<2x128xf32>,
    %c1_i32 = arith.constant 1 : i32
    %39 = arith.cmpi eq, %arg1, %c1_i32 : i32
    %40 = arith.extui %39 : i1 to i32
    %c0_i32_12 = arith.constant 0 : i32
    %41 = arith.cmpi ne, %40, %c0_i32_12 : i32
    scf.if %41 {
      %c0_13 = arith.constant 0 : index
      %c0_14 = arith.constant 0 : index
      %42 = vector.load %arg8[%c0_13, %c0_14] : memref<2x128xf32, #tpu.memory_space<vmem>>, vector<2x128xf32>
      %cst_15 = arith.constant 3.906250e-03 : f32
      %43 = vector.broadcast %cst_15 : f32 to vector<2x128xf32>
      %44 = arith.mulf %42, %43 : vector<2x128xf32>
      %c0_16 = arith.constant 0 : index
      %c0_17 = arith.constant 0 : index
      %45 = vector.load %arg5[%c0_16, %c0_17] : memref<128x128xf32, #tpu.memory_space<vmem>>, vector<128x128xf32>
      %cst_18 = arith.constant dense<0.000000e+00> : vector<2x128xf32>
      %46 = tpu.matmul %44, %45, %cst_18 {dimension_numbers = #tpu.dot_dimension_numbers<[1], [0], [0], [1], [0, 0, 1, 1], [], []>} : vector<2x128xf32>, vector<128x128xf32>, vector<2x128xf32> -> vector<2x128xf32>
      %c0_19 = arith.constant 0 : index
      %c0_20 = arith.constant 0 : index
      %47 = vector.load %arg6[%c0_19, %c0_20] : memref<1x128xf32, #tpu.memory_space<vmem>>, vector<1x128xf32>
      %48 = vector.broadcast %47 : vector<1x128xf32> to vector<2x128xf32>
      %49 = arith.addf %46, %48 : vector<2x128xf32>
      %c0_21 = arith.constant 0 : index
      %c0_22 = arith.constant 0 : index
      %50 = vector.load %arg7[%c0_21, %c0_22] : memref<2x128xf32, #tpu.memory_space<vmem>>, vector<2x128xf32>
      tpu.vector_store %arg7[%c0_21, %c0_22], %49 {strides = array<i32>} : memref<2x128xf32, #tpu.memory_space<vmem>>, vector<2x128xf32>,
    } else {
    }
    return
  }
  func.func @transform_0(%arg0: i32, %arg1: i32) -> (i32, i32, i32) {
    %c0_i32 = arith.constant 0 : i32
    %c0_i32_0 = arith.constant 0 : i32
    return %arg0, %arg1, %c0_i32 : i32, i32, i32
  }
  func.func @transform_1(%arg0: i32, %arg1: i32) -> (i32, i32) {
    %c0_i32 = arith.constant 0 : i32
    %c0_i32_0 = arith.constant 0 : i32
    %c0_i32_1 = arith.constant 0 : i32
    return %c0_i32, %c0_i32_0 : i32, i32
  }
  func.func @transform_2(%arg0: i32, %arg1: i32) -> (i32, i32) {
    %c0_i32 = arith.constant 0 : i32
    %c0_i32_0 = arith.constant 0 : i32
    %c0_i32_1 = arith.constant 0 : i32
    return %c0_i32, %c0_i32_0 : i32, i32
  }
  func.func @transform_3(%arg0: i32, %arg1: i32) -> (i32, i32) {
    %c0_i32 = arith.constant 0 : i32
    %c0_i32_0 = arith.constant 0 : i32
    %c0_i32_1 = arith.constant 0 : i32
    return %c0_i32, %c0_i32_0 : i32, i32
  }
  func.func @transform_4(%arg0: i32, %arg1: i32) -> (i32, i32) {
    %c0_i32 = arith.constant 0 : i32
    %c0_i32_0 = arith.constant 0 : i32
    %c0_i32_1 = arith.constant 0 : i32
    return %c0_i32, %c0_i32_0 : i32, i32
  }
  func.func @transform_5(%arg0: i32, %arg1: i32) -> (i32, i32) {
    %c0_i32 = arith.constant 0 : i32
    %c0_i32_0 = arith.constant 0 : i32
    return %arg0, %c0_i32 : i32, i32
  }
}

</mosaic_0001>

<llo_original>
// kernel: tpu_custom_call.1
$region0: #{tpu_custom_call.1}
  #allocation0 [shape = 'u32[]', space=smem, size = 0x4, offset = 0x4, fixed_abs, tag = 'smem constant byte address 0x4 - core index']
  #allocation1 [shape = 'u32[144,128]{1,0:T(1,128)}', space=vmem, size = 0x12000, scoped, tag = 'internal scratch']
  #allocation2 [shape = 'f32[2,128]{1,0:T(2,128)}', space=vmem, size = 0x400, scoped, tag = 'scratch operand']
  %s0 = inlined_call_operand.vmem [shape: bf16[2,256,3], index: 0, kind: input, shape index: {}]
  %s1 = inlined_call_operand.vmem [shape: f32[3,128], index: 1, kind: input, shape index: {}]
  %s2 = inlined_call_operand.vmem [shape: f32[1,128], index: 2, kind: input, shape index: {}]
  %s3 = inlined_call_operand.vmem [shape: f32[128,128], index: 3, kind: input, shape index: {}]
  %s4 = inlined_call_operand.vmem [shape: f32[1,128], index: 4, kind: input, shape index: {}]
  %s5 = inlined_call_operand.hbm [shape: f32[2,128], index: 5, kind: output, shape index: {}]
  %s6 = sld [smem:[#allocation0]]
  $region102: #{tpu_custom_call.1} parent=0
    _
  %s8 = ssub.s32 1, %s6
  %s9 = scalar_select 0, %s8, %s6
  $region1: #{tpu_custom_call.1} parent=0
    #allocation3 [shape = 'u8[131072]{0}', space=vmem, size = 0x20000, scoped, tag = 'input window, operand 0']
    #allocation4 [shape = 'u8[1024]{0}', space=vmem, size = 0x400, scoped, tag = 'output window, operand 0, single buffered']
    #allocation5 [shape = 's32[2]{0}', space=sflag, size = 0x8, scoped, tag = 'scoped memory for tpu_custom_call.1']
    %10 = vsyncpa [#allocation5], 0
    loop: start=0, step=1, limit=4
    $region2: #{tpu_custom_call.1} parent=1 // loop_pre_header
      _
    $region3: #{tpu_custom_call.1} parent=1 // loop_header
      %s12 = sphi 0, %s16
      %p13 = scmp.ge.s32.totalorder %s12, 4
      %s19 = sphi 0, %s31
      %s20 = sphi 0, %s27
      %s21 = sphi 0, %s19
      %s22 = sphi 0, %s20
      %s23 = sphi 0, %s21
      %s24 = sphi 0, %s22
      %s36 = sphi 0, %s38
      %s39 = sphi 0, %s36
      %s40 = sphi 0, %s39
      %s56 = sphi 0, %s40
      %s60 = sphi 0, %s60
      %s62 = sphi 0, %s60
      %s63 = sphi 0, %s62
      %s77 = sphi 0, %s63
      %s81 = sphi 0, %s81
      %s83 = sphi 0, %s81
      %s84 = sphi 0, %s83
      %s98 = sphi 0, %s84
      %s102 = sphi 0, %s102
      %s104 = sphi 0, %s102
      %s105 = sphi 0, %s104
      %s119 = sphi 0, %s105
      %s123 = sphi 0, %s123
      %s125 = sphi 0, %s123
      %s126 = sphi 0, %s125
      %s140 = sphi 0, %s126
      %s146 = sphi 0, %s148
      %s149 = sphi 0, %s146
      %s150 = sphi 0, %s149
      %s166 = sphi 0, %s150
    $region4: #{tpu_custom_call.1} parent=1 // loop_header_branch
      %15 = sbr.rel (%p13) target = $region8
    $region5: #{tpu_custom_call.1} parent=1 // loop_body
      %s17 = ssub.s32 %s12, 1
      %s18 = ssub.s32 %s12, 2
      %s25 = sadd.s32 1, %s20
      %p26 = scmp.ge.s32.totalorder %s25, 2
      %s27 = scalar_select %p26, 0, %s25
      %s28 = sadd.s32 1, %s19
      %s29 = scalar_select %p26, %s28, %s19
      %p30 = scmp.ge.s32.totalorder %s29, 1
      %s31 = scalar_select %p30, 0, %s29
      %s32 = ssub.s32 %s19, %s31
      %s33 = ssub.s32 %s20, %s27
      %s34 = sor.u32 %s32, %s33
      %p35 = scmp.eq.s32.totalorder %s34, 0
      %s37 = sadd.s32 %s36, 1
      %s38 = scalar_select %p35, %s36, %s37
      %p41 = pneg %p35
      %p42 = scmp.eq.s32.totalorder %s12, 1
      %p43 = por %p41, %p42
      %p44 = scmp.ne.s32.totalorder %s36, %s39
      %p45 = scmp.eq.s32.totalorder %s12, 0
      %p46 = por %p44, %p45
      %p47 = scmp.ne.s32.totalorder %s36, %s39
      %p48 = scmp.eq.s32.totalorder %s17, 1
      %p49 = por %p47, %p48
      %p50 = scmp.ne.s32.totalorder %s39, %s40
      %p51 = scmp.eq.s32.totalorder %s17, 0
      %p52 = por %p50, %p51
      %p53 = scmp.ne.s32.totalorder %s39, %s40
      %p54 = scmp.eq.s32.totalorder %s18, 1
      %p55 = por %p53, %p54
      %p57 = scmp.ne.s32.totalorder %s40, %s56
      %p58 = scmp.eq.s32.totalorder %s18, 0
      %p59 = por %p57, %p58
      %s61 = sadd.s32 %s60, 1
      %p64 = scmp.eq.s32.totalorder %s12, 1
      %p65 = scmp.ne.s32.totalorder %s60, %s62
      %p66 = scmp.eq.s32.totalorder %s12, 0
      %p67 = por %p65, %p66
      %p68 = scmp.ne.s32.totalorder %s60, %s62
      %p69 = scmp.eq.s32.totalorder %s17, 1
      %p70 = por %p68, %p69
      %p71 = scmp.ne.s32.totalorder %s62, %s63
      %p72 = scmp.eq.s32.totalorder %s17, 0
      %p73 = por %p71, %p72
      %p74 = scmp.ne.s32.totalorder %s62, %s63
      %p75 = scmp.eq.s32.totalorder %s18, 1
      %p76 = por %p74, %p75
      %p78 = scmp.ne.s32.totalorder %s63, %s77
      %p79 = scmp.eq.s32.totalorder %s18, 0
      %p80 = por %p78, %p79
      %s82 = sadd.s32 %s81, 1
      %p85 = scmp.eq.s32.totalorder %s12, 1
      %p86 = scmp.ne.s32.totalorder %s81, %s83
      %p87 = scmp.eq.s32.totalorder %s12, 0
      %p88 = por %p86, %p87
      %p89 = scmp.ne.s32.totalorder %s81, %s83
      %p90 = scmp.eq.s32.totalorder %s17, 1
      %p91 = por %p89, %p90
      %p92 = scmp.ne.s32.totalorder %s83, %s84
      %p93 = scmp.eq.s32.totalorder %s17, 0
      %p94 = por %p92, %p93
      %p95 = scmp.ne.s32.totalorder %s83, %s84
      %p96 = scmp.eq.s32.totalorder %s18, 1
      %p97 = por %p95, %p96
      %p99 = scmp.ne.s32.totalorder %s84, %s98
      %p100 = scmp.eq.s32.totalorder %s18, 0
      %p101 = por %p99, %p100
      %s103 = sadd.s32 %s102, 1
      %p106 = scmp.eq.s32.totalorder %s12, 1
      %p107 = scmp.ne.s32.totalorder %s102, %s104
      %p108 = scmp.eq.s32.totalorder %s12, 0
      %p109 = por %p107, %p108
      %p110 = scmp.ne.s32.totalorder %s102, %s104
      %p111 = scmp.eq.s32.totalorder %s17, 1
      %p112 = por %p110, %p111
      %p113 = scmp.ne.s32.totalorder %s104, %s105
      %p114 = scmp.eq.s32.totalorder %s17, 0
      %p115 = por %p113, %p114
      %p116 = scmp.ne.s32.totalorder %s104, %s105
      %p117 = scmp.eq.s32.totalorder %s18, 1
      %p118 = por %p116, %p117
      %p120 = scmp.ne.s32.totalorder %s105, %s119
      %p121 = scmp.eq.s32.totalorder %s18, 0
      %p122 = por %p120, %p121
      %s124 = sadd.s32 %s123, 1
      %p127 = scmp.eq.s32.totalorder %s12, 1
      %p128 = scmp.ne.s32.totalorder %s123, %s125
      %p129 = scmp.eq.s32.totalorder %s12, 0
      %p130 = por %p128, %p129
      %p131 = scmp.ne.s32.totalorder %s123, %s125
      %p132 = scmp.eq.s32.totalorder %s17, 1
      %p133 = por %p131, %p132
      %p134 = scmp.ne.s32.totalorder %s125, %s126
      %p135 = scmp.eq.s32.totalorder %s17, 0
      %p136 = por %p134, %p135
      %p137 = scmp.ne.s32.totalorder %s125, %s126
      %p138 = scmp.eq.s32.totalorder %s18, 1
      %p139 = por %p137, %p138
      %p141 = scmp.ne.s32.totalorder %s126, %s140
      %p142 = scmp.eq.s32.totalorder %s18, 0
      %p143 = por %p141, %p142
      %s144 = ssub.s32 %s19, %s31
      %p145 = scmp.eq.s32.totalorder %s144, 0
      %s147 = sadd.s32 %s146, 1
      %s148 = scalar_select %p145, %s146, %s147
      %p151 = pneg %p145
      %p152 = scmp.eq.s32.totalorder %s12, 1
      %p153 = por %p151, %p152
      %p154 = scmp.ne.s32.totalorder %s146, %s149
      %p155 = scmp.eq.s32.totalorder %s12, 0
      %p156 = por %p154, %p155
      %p157 = scmp.ne.s32.totalorder %s146, %s149
      %p158 = scmp.eq.s32.totalorder %s17, 1
      %p159 = por %p157, %p158
      %p160 = scmp.ne.s32.totalorder %s149, %s150
      %p161 = scmp.eq.s32.totalorder %s17, 0
      %p162 = por %p160, %p161
      %p163 = scmp.ne.s32.totalorder %s149, %s150
      %p164 = scmp.eq.s32.totalorder %s18, 1
      %p165 = por %p163, %p164
      %p167 = scmp.ne.s32.totalorder %s150, %s166
      %p168 = scmp.eq.s32.totalorder %s18, 0
      %p169 = por %p167, %p168
      %p170 = scmp.le.s32.totalorder 1, %s12
      %p171 = scmp.lt.s32.totalorder %s12, 3
      %p172 = pnand %p170, %p171
      %p173 = pneg %p172
      // Predicated region
      $region9: #{tpu_custom_call.1} parent=5 // pred_check
        _
      $region10: #{tpu_custom_call.1} parent=5 // pred_check_branch
        %175 = sbr.rel (%p172) target = $region12
      $region11: #{tpu_custom_call.1} parent=5 // pred_region
        %s176 = ssub.s32 %s12, 1
        // Predicated region
        $region13: #{tpu_custom_call.1} parent=11 // pred_check
          %p177 = pneg %p73
        $region14: #{tpu_custom_call.1} parent=11 // pred_check_branch
          %179 = sbr.rel (%p177) target = $region16
        $region15: #{tpu_custom_call.1} parent=11 // pred_region
          _
        $region16: #{tpu_custom_call.1} parent=11 // pred_fallthru
          _
        // Predicated region
        $region17: #{tpu_custom_call.1} parent=11 // pred_check
          %p180 = pneg %p94
        $region18: #{tpu_custom_call.1} parent=11 // pred_check_branch
          %182 = sbr.rel (%p180) target = $region20
        $region19: #{tpu_custom_call.1} parent=11 // pred_region
          _
        $region20: #{tpu_custom_call.1} parent=11 // pred_fallthru
          _
        // Predicated region
        $region21: #{tpu_custom_call.1} parent=11 // pred_check
          %p183 = pneg %p115
        $region22: #{tpu_custom_call.1} parent=11 // pred_check_branch
          %185 = sbr.rel (%p183) target = $region24
        $region23: #{tpu_custom_call.1} parent=11 // pred_region
          _
        $region24: #{tpu_custom_call.1} parent=11 // pred_fallthru
          _
        // Predicated region
        $region25: #{tpu_custom_call.1} parent=11 // pred_check
          %p186 = pneg %p136
        $region26: #{tpu_custom_call.1} parent=11 // pred_check_branch
          %188 = sbr.rel (%p186) target = $region28
        $region27: #{tpu_custom_call.1} parent=11 // pred_region
          _
        $region28: #{tpu_custom_call.1} parent=11 // pred_fallthru
          _
      $region12: #{tpu_custom_call.1} parent=5 // pred_fallthru
        _
      %p189 = scmp.lt.s32.totalorder %s12, 2
      // Predicated region
      $region29: #{tpu_custom_call.1} parent=5 // pred_check
        %p190 = pneg %p189
      $region30: #{tpu_custom_call.1} parent=5 // pred_check_branch
        %192 = sbr.rel (%p190) target = $region32
      $region31: #{tpu_custom_call.1} parent=5 // pred_region
        // Predicated region
        $region33: #{tpu_custom_call.1} parent=31 // pred_check
          %p193 = pneg %p46
        $region34: #{tpu_custom_call.1} parent=31 // pred_check_branch
          %195 = sbr.rel (%p193) target = $region36
        $region35: #{tpu_custom_call.1} parent=31 // pred_region
          %s196 = sand.u32 %s36, 1
          %s197 = sand.u32 %s36, 1
          %s198 = smul.addr %s197, 128
          %s199 = scalar_lea.vmem [#allocation3], %s198
          %s200 = smul.u32 2, %s19
          %s201 = smul.u32 16, %s20
          %s202 = smul.addr %s200, 32
          %s203 = sadd.s32 %s201, %s202
          %s204 = smul.addr %s203, 4
          %s205 = scalar_lea.vmem %s0, %s204
          // Predicated region
          $region37: #{tpu_custom_call.1} parent=35 // pred_check
            _
          $region38: #{tpu_custom_call.1} parent=35 // pred_check_branch
            %207 = sbr.rel (0) target = $region40
          $region39: #{tpu_custom_call.1} parent=35 // pred_region
            // Predicated region
            $region41: #{tpu_custom_call.1} parent=39 // pred_check
              _
            $region42: #{tpu_custom_call.1} parent=39 // pred_check_branch
              %209 = sbr.rel target = $region44
            $region43: #{tpu_custom_call.1} parent=39 // pred_region
              // Predicated region
              $region56: #{tpu_custom_call.1} parent=43 // pred_check
                _
              $region57: #{tpu_custom_call.1} parent=43 // pred_check_branch
                %287 = sbr.rel (0) target = $region59
              $region58: #{tpu_custom_call.1} parent=43 // pred_region
                loop: start=0, step=1, limit=1
                $region60: #{tpu_custom_call.1} parent=58 // loop_pre_header
                  _
                $region61: #{tpu_custom_call.1} parent=58 // loop_header
                  %s289 = sphi 0, %s293
                  %p290 = scmp.ge.s32.totalorder %s289, 1
                  %s294 = sphi %s205, %s205
                  %s295 = sphi %s199, %s199
                $region62: #{tpu_custom_call.1} parent=58 // loop_header_branch
                  %292 = sbr.rel (%p290) target = $region66
                $region63: #{tpu_custom_call.1} parent=58 // loop_body
                  _
                $region64: #{tpu_custom_call.1} parent=58 // loop_footer
                  %s293 = sadd.s32 1, %s289
                $region65: #{tpu_custom_call.1} parent=58 // loop_footer_branch
                  %288 = sbr.rel target = $region61
                $region66: #{tpu_custom_call.1} parent=58 // loop_exit
                  _
                %s297 = ssub.s32 16, 1
                loop: start=0, step=1, limit=1
                $region67: #{tpu_custom_call.1} parent=58 // loop_pre_header
                  _
                $region68: #{tpu_custom_call.1} parent=58 // loop_header
                  %s299 = sphi 0, %s303
                  %p300 = scmp.ge.s32.totalorder %s299, 1
                  %s304 = sphi %s205, %s205
                  %s305 = sphi %s199, %s199
                $region69: #{tpu_custom_call.1} parent=58 // loop_header_branch
                  %302 = sbr.rel (%p300) target = $region73
                $region70: #{tpu_custom_call.1} parent=58 // loop_body
                  %v306 = vld [vmem:[%s304] sm:%s297]
                  %307 = vst [vmem:[%s305] sm:%s297] %v306
                  %v308 = vld [vmem:[%s304 + $0x4] sm:%s297]
                  %309 = vst [vmem:[%s305 + $0x4] sm:%s297] %v308
                  %v310 = vld [vmem:[%s304 + $0x8] sm:%s297]
                  %311 = vst [vmem:[%s305 + $0x8] sm:%s297] %v310
                  %v312 = vld [vmem:[%s304 + $0xc] sm:%s297]
                  %313 = vst [vmem:[%s305 + $0xc] sm:%s297] %v312
                  %v314 = vld [vmem:[%s304 + $0x10] sm:%s297]
                  %315 = vst [vmem:[%s305 + $0x10] sm:%s297] %v314
                  %v316 = vld [vmem:[%s304 + $0x14] sm:%s297]
                  %317 = vst [vmem:[%s305 + $0x14] sm:%s297] %v316
                  %v318 = vld [vmem:[%s304 + $0x18] sm:%s297]
                  %319 = vst [vmem:[%s305 + $0x18] sm:%s297] %v318
                  %v320 = vld [vmem:[%s304 + $0x1c] sm:%s297]
                  %321 = vst [vmem:[%s305 + $0x1c] sm:%s297] %v320
                  %v322 = vld [vmem:[%s304 + $0x20] sm:%s297]
                  %323 = vst [vmem:[%s305 + $0x20] sm:%s297] %v322
                  %v324 = vld [vmem:[%s304 + $0x24] sm:%s297]
                  %325 = vst [vmem:[%s305 + $0x24] sm:%s297] %v324
                  %v326 = vld [vmem:[%s304 + $0x28] sm:%s297]
                  %327 = vst [vmem:[%s305 + $0x28] sm:%s297] %v326
                  %v328 = vld [vmem:[%s304 + $0x2c] sm:%s297]
                  %329 = vst [vmem:[%s305 + $0x2c] sm:%s297] %v328
                  %v330 = vld [vmem:[%s304 + $0x30] sm:%s297]
                  %331 = vst [vmem:[%s305 + $0x30] sm:%s297] %v330
                  %v332 = vld [vmem:[%s304 + $0x34] sm:%s297]
                  %333 = vst [vmem:[%s305 + $0x34] sm:%s297] %v332
                  %v334 = vld [vmem:[%s304 + $0x38] sm:%s297]
                  %335 = vst [vmem:[%s305 + $0x38] sm:%s297] %v334
                  %v336 = vld [vmem:[%s304 + $0x3c] sm:%s297]
                  %337 = vst [vmem:[%s305 + $0x3c] sm:%s297] %v336
                  %v338 = vld [vmem:[%s304 + $0x80] sm:%s297]
                  %339 = vst [vmem:[%s305 + $0x40] sm:%s297] %v338
                  %v340 = vld [vmem:[%s304 + $0x84] sm:%s297]
                  %341 = vst [vmem:[%s305 + $0x44] sm:%s297] %v340
                  %v342 = vld [vmem:[%s304 + $0x88] sm:%s297]
                  %343 = vst [vmem:[%s305 + $0x48] sm:%s297] %v342
                  %v344 = vld [vmem:[%s304 + $0x8c] sm:%s297]
                  %345 = vst [vmem:[%s305 + $0x4c] sm:%s297] %v344
                  %v346 = vld [vmem:[%s304 + $0x90] sm:%s297]
                  %347 = vst [vmem:[%s305 + $0x50] sm:%s297] %v346
                  %v348 = vld [vmem:[%s304 + $0x94] sm:%s297]
                  %349 = vst [vmem:[%s305 + $0x54] sm:%s297] %v348
                  %v350 = vld [vmem:[%s304 + $0x98] sm:%s297]
                  %351 = vst [vmem:[%s305 + $0x58] sm:%s297] %v350
                  %v352 = vld [vmem:[%s304 + $0x9c] sm:%s297]
                  %353 = vst [vmem:[%s305 + $0x5c] sm:%s297] %v352
                  %v354 = vld [vmem:[%s304 + $0xa0] sm:%s297]
                  %355 = vst [vmem:[%s305 + $0x60] sm:%s297] %v354
                  %v356 = vld [vmem:[%s304 + $0xa4] sm:%s297]
                  %357 = vst [vmem:[%s305 + $0x64] sm:%s297] %v356
                  %v358 = vld [vmem:[%s304 + $0xa8] sm:%s297]
                  %359 = vst [vmem:[%s305 + $0x68] sm:%s297] %v358
                  %v360 = vld [vmem:[%s304 + $0xac] sm:%s297]
                  %361 = vst [vmem:[%s305 + $0x6c] sm:%s297] %v360
                  %v362 = vld [vmem:[%s304 + $0xb0] sm:%s297]
                  %363 = vst [vmem:[%s305 + $0x70] sm:%s297] %v362
                  %v364 = vld [vmem:[%s304 + $0xb4] sm:%s297]
                  %365 = vst [vmem:[%s305 + $0x74] sm:%s297] %v364
                  %v366 = vld [vmem:[%s304 + $0xb8] sm:%s297]
                  %367 = vst [vmem:[%s305 + $0x78] sm:%s297] %v366
                  %v368 = vld [vmem:[%s304 + $0xbc] sm:%s297]
                  %369 = vst [vmem:[%s305 + $0x7c] sm:%s297] %v368
                $region71: #{tpu_custom_call.1} parent=58 // loop_footer
                  %s303 = sadd.s32 1, %s299
                $region72: #{tpu_custom_call.1} parent=58 // loop_footer_branch
                  %298 = sbr.rel target = $region68
                $region73: #{tpu_custom_call.1} parent=58 // loop_exit
                  _
              $region59: #{tpu_custom_call.1} parent=43 // pred_fallthru
                _
            $region44: #{tpu_custom_call.1} parent=39 // pred_fallthru
              _
            // Predicated region
            $region45: #{tpu_custom_call.1} parent=39 // pred_check
              _
            $region46: #{tpu_custom_call.1} parent=39 // pred_check_branch
              %211 = sbr.rel (0) target = $region48
            $region47: #{tpu_custom_call.1} parent=39 // pred_region
              %s213 = ssub.s32 16, 1
              loop: start=0, step=1, limit=1
              $region49: #{tpu_custom_call.1} parent=47 // loop_pre_header
                _
              $region50: #{tpu_custom_call.1} parent=47 // loop_header
                %s215 = sphi 0, %s219
                %p216 = scmp.ge.s32.totalorder %s215, 1
                %s220 = sphi %s205, %s205
                %s221 = sphi %s199, %s199
              $region51: #{tpu_custom_call.1} parent=47 // loop_header_branch
                %218 = sbr.rel (%p216) target = $region55
              $region52: #{tpu_custom_call.1} parent=47 // loop_body
                %v222 = vld [vmem:[%s220] sm:%s213]
                %223 = vst [vmem:[%s221] sm:%s213] %v222
                %v224 = vld [vmem:[%s220 + $0x4] sm:%s213]
                %225 = vst [vmem:[%s221 + $0x4] sm:%s213] %v224
                %v226 = vld [vmem:[%s220 + $0x8] sm:%s213]
                %227 = vst [vmem:[%s221 + $0x8] sm:%s213] %v226
                %v228 = vld [vmem:[%s220 + $0xc] sm:%s213]
                %229 = vst [vmem:[%s221 + $0xc] sm:%s213] %v228
                %v230 = vld [vmem:[%s220 + $0x10] sm:%s213]
                %231 = vst [vmem:[%s221 + $0x10] sm:%s213] %v230
                %v232 = vld [vmem:[%s220 + $0x14] sm:%s213]
                %233 = vst [vmem:[%s221 + $0x14] sm:%s213] %v232
                %v234 = vld [vmem:[%s220 + $0x18] sm:%s213]
                %235 = vst [vmem:[%s221 + $0x18] sm:%s213] %v234
                %v236 = vld [vmem:[%s220 + $0x1c] sm:%s213]
                %237 = vst [vmem:[%s221 + $0x1c] sm:%s213] %v236
                %v238 = vld [vmem:[%s220 + $0x20] sm:%s213]
                %239 = vst [vmem:[%s221 + $0x20] sm:%s213] %v238
                %v240 = vld [vmem:[%s220 + $0x24] sm:%s213]
                %241 = vst [vmem:[%s221 + $0x24] sm:%s213] %v240
                %v242 = vld [vmem:[%s220 + $0x28] sm:%s213]
                %243 = vst [vmem:[%s221 + $0x28] sm:%s213] %v242
                %v244 = vld [vmem:[%s220 + $0x2c] sm:%s213]
                %245 = vst [vmem:[%s221 + $0x2c] sm:%s213] %v244
                %v246 = vld [vmem:[%s220 + $0x30] sm:%s213]
                %247 = vst [vmem:[%s221 + $0x30] sm:%s213] %v246
                %v248 = vld [vmem:[%s220 + $0x34] sm:%s213]
                %249 = vst [vmem:[%s221 + $0x34] sm:%s213] %v248
                %v250 = vld [vmem:[%s220 + $0x38] sm:%s213]
                %251 = vst [vmem:[%s221 + $0x38] sm:%s213] %v250
                %v252 = vld [vmem:[%s220 + $0x3c] sm:%s213]
                %253 = vst [vmem:[%s221 + $0x3c] sm:%s213] %v252
                %v254 = vld [vmem:[%s220 + $0x80] sm:%s213]
                %255 = vst [vmem:[%s221 + $0x40] sm:%s213] %v254
                %v256 = vld [vmem:[%s220 + $0x84] sm:%s213]
                %257 = vst [vmem:[%s221 + $0x44] sm:%s213] %v256
                %v258 = vld [vmem:[%s220 + $0x88] sm:%s213]
                %259 = vst [vmem:[%s221 + $0x48] sm:%s213] %v258
                %v260 = vld [vmem:[%s220 + $0x8c] sm:%s213]
                %261 = vst [vmem:[%s221 + $0x4c] sm:%s213] %v260
                %v262 = vld [vmem:[%s220 + $0x90] sm:%s213]
                %263 = vst [vmem:[%s221 + $0x50] sm:%s213] %v262
                %v264 = vld [vmem:[%s220 + $0x94] sm:%s213]
                %265 = vst [vmem:[%s221 + $0x54] sm:%s213] %v264
                %v266 = vld [vmem:[%s220 + $0x98] sm:%s213]
                %267 = vst [vmem:[%s221 + $0x58] sm:%s213] %v266
                %v268 = vld [vmem:[%s220 + $0x9c] sm:%s213]
                %269 = vst [vmem:[%s221 + $0x5c] sm:%s213] %v268
                %v270 = vld [vmem:[%s220 + $0xa0] sm:%s213]
                %271 = vst [vmem:[%s221 + $0x60] sm:%s213] %v270
                %v272 = vld [vmem:[%s220 + $0xa4] sm:%s213]
                %273 = vst [vmem:[%s221 + $0x64] sm:%s213] %v272
                %v274 = vld [vmem:[%s220 + $0xa8] sm:%s213]
                %275 = vst [vmem:[%s221 + $0x68] sm:%s213] %v274
                %v276 = vld [vmem:[%s220 + $0xac] sm:%s213]
                %277 = vst [vmem:[%s221 + $0x6c] sm:%s213] %v276
                %v278 = vld [vmem:[%s220 + $0xb0] sm:%s213]
                %279 = vst [vmem:[%s221 + $0x70] sm:%s213] %v278
                %v280 = vld [vmem:[%s220 + $0xb4] sm:%s213]
                %281 = vst [vmem:[%s221 + $0x74] sm:%s213] %v280
                %v282 = vld [vmem:[%s220 + $0xb8] sm:%s213]
                %283 = vst [vmem:[%s221 + $0x78] sm:%s213] %v282
                %v284 = vld [vmem:[%s220 + $0xbc] sm:%s213]
                %285 = vst [vmem:[%s221 + $0x7c] sm:%s213] %v284
              $region53: #{tpu_custom_call.1} parent=47 // loop_footer
                %s219 = sadd.s32 1, %s215
              $region54: #{tpu_custom_call.1} parent=47 // loop_footer_branch
                %214 = sbr.rel target = $region50
              $region55: #{tpu_custom_call.1} parent=47 // loop_exit
                _
            $region48: #{tpu_custom_call.1} parent=39 // pred_fallthru
              _
          $region40: #{tpu_custom_call.1} parent=35 // pred_fallthru
            _
          %370 = vnop
        $region36: #{tpu_custom_call.1} parent=31 // pred_fallthru
          _
      $region32: #{tpu_custom_call.1} parent=5 // pred_fallthru
        _
      %p371 = scmp.le.s32.totalorder 1, %s12
      %p372 = scmp.lt.s32.totalorder %s12, 3
      %p373 = pnand %p371, %p372
      %p374 = pneg %p373
      // Predicated region
      $region74: #{tpu_custom_call.1} parent=5 // pred_check
        _
      $region75: #{tpu_custom_call.1} parent=5 // pred_check_branch
        %376 = sbr.rel (%p373) target = $region77
      $region76: #{tpu_custom_call.1} parent=5 // pred_region
        %s377 = ssub.s32 %s12, 1
        %s378 = sand.u32 %s39, 1
        %s379 = sand.u32 %s39, 1
        %s380 = smul.addr %s379, 128
        %s381 = scalar_lea.vmem [#allocation3], %s380
        // Predicated region
        $region78: #{tpu_custom_call.1} parent=76 // pred_check
          %p382 = pneg %p52
        $region79: #{tpu_custom_call.1} parent=76 // pred_check_branch
          %384 = sbr.rel (%p382) target = $region81
        $region80: #{tpu_custom_call.1} parent=76 // pred_region
          _
        $region81: #{tpu_custom_call.1} parent=76 // pred_fallthru
          _
        %s385 = sand.u32 %s39, 1
        %s386 = sand.u32 %s39, 1
        %s387 = smul.addr %s386, 128
        %s388 = scalar_lea.vmem [#allocation3], %s387
        %p389 = pneg %p52
        %p390 = pneg %p49
        %p391 = pneg %p73
        %p392 = pneg %p70
        %p393 = pneg %p94
        %p394 = pneg %p91
        %p395 = pneg %p115
        %p396 = pneg %p112
        %p397 = pneg %p136
        %p398 = pneg %p133
        %p399 = pneg %p162
        %p400 = pneg %p159
        %s401 = smul.u32 2, %s21
        %s402 = smul.u32 16, %s22
        %p403 = scmp.eq.s32.totalorder %s22, 0
        // Predicated region
        $region82: #{tpu_custom_call.1} parent=76 // pred_check
          %p404 = pneg %p403
        $region83: #{tpu_custom_call.1} parent=76 // pred_check_branch
          %406 = sbr.rel (%p404) target = $region85
        $region84: #{tpu_custom_call.1} parent=76 // pred_region
          %407 = vst [vmem:[#allocation2] sm:$0x3] 0.0
        $region85: #{tpu_custom_call.1} parent=76 // pred_fallthru
          _
        %v408 = vld [vmem:[%s381] sm:$0xf]
        %v409 = vld [vmem:[%s381 + $0x4] sm:$0xf]
        %v410 = vld [vmem:[%s381 + $0x8] sm:$0xf]
        %v411 = vld [vmem:[%s381 + $0xc] sm:$0xf]
        %v412 = vld [vmem:[%s381 + $0x10] sm:$0xf]
        %v413 = vld [vmem:[%s381 + $0x14] sm:$0xf]
        %v414 = vld [vmem:[%s381 + $0x18] sm:$0xf]
        %v415 = vld [vmem:[%s381 + $0x1c] sm:$0xf]
        %v416 = vld [vmem:[%s381 + $0x20] sm:$0xf]
        %v417 = vld [vmem:[%s381 + $0x24] sm:$0xf]
        %v418 = vld [vmem:[%s381 + $0x28] sm:$0xf]
        %v419 = vld [vmem:[%s381 + $0x2c] sm:$0xf]
        %v420 = vld [vmem:[%s381 + $0x30] sm:$0xf]
        %v421 = vld [vmem:[%s381 + $0x34] sm:$0xf]
        %v422 = vld [vmem:[%s381 + $0x38] sm:$0xf]
        %v423 = vld [vmem:[%s381 + $0x3c] sm:$0xf]
        %v424 = vld [vmem:[%s381 + $0x40] sm:$0xf]
        %v425 = vld [vmem:[%s381 + $0x44] sm:$0xf]
        %v426 = vld [vmem:[%s381 + $0x48] sm:$0xf]
        %v427 = vld [vmem:[%s381 + $0x4c] sm:$0xf]
        %v428 = vld [vmem:[%s381 + $0x50] sm:$0xf]
        %v429 = vld [vmem:[%s381 + $0x54] sm:$0xf]
        %v430 = vld [vmem:[%s381 + $0x58] sm:$0xf]
        %v431 = vld [vmem:[%s381 + $0x5c] sm:$0xf]
        %v432 = vld [vmem:[%s381 + $0x60] sm:$0xf]
        %v433 = vld [vmem:[%s381 + $0x64] sm:$0xf]
        %v434 = vld [vmem:[%s381 + $0x68] sm:$0xf]
        %v435 = vld [vmem:[%s381 + $0x6c] sm:$0xf]
        %v436 = vld [vmem:[%s381 + $0x70] sm:$0xf]
        %v437 = vld [vmem:[%s381 + $0x74] sm:$0xf]
        %v438 = vld [vmem:[%s381 + $0x78] sm:$0xf]
        %v439 = vld [vmem:[%s381 + $0x7c] sm:$0xf]
        %v440 = vunpack.c.l.bf16 %v408
        %v441 = vunpack.c.l.bf16 %v409
        %v442 = vunpack.c.l.bf16 %v410
        %v443 = vunpack.c.l.bf16 %v411
        %v444 = vunpack.c.l.bf16 %v412
        %v445 = vunpack.c.l.bf16 %v413
        %v446 = vunpack.c.l.bf16 %v414
        %v447 = vunpack.c.l.bf16 %v415
        %v448 = vunpack.c.l.bf16 %v416
        %v449 = vunpack.c.l.bf16 %v417
        %v450 = vunpack.c.l.bf16 %v418
        %v451 = vunpack.c.l.bf16 %v419
        %v452 = vunpack.c.l.bf16 %v420
        %v453 = vunpack.c.l.bf16 %v421
        %v454 = vunpack.c.l.bf16 %v422
        %v455 = vunpack.c.l.bf16 %v423
        %v456 = vunpack.c.l.bf16 %v424
        %v457 = vunpack.c.l.bf16 %v425
        %v458 = vunpack.c.l.bf16 %v426
        %v459 = vunpack.c.l.bf16 %v427
        %v460 = vunpack.c.l.bf16 %v428
        %v461 = vunpack.c.l.bf16 %v429
        %v462 = vunpack.c.l.bf16 %v430
        %v463 = vunpack.c.l.bf16 %v431
        %v464 = vunpack.c.l.bf16 %v432
        %v465 = vunpack.c.l.bf16 %v433
        %v466 = vunpack.c.l.bf16 %v434
        %v467 = vunpack.c.l.bf16 %v435
        %v468 = vunpack.c.l.bf16 %v436
        %v469 = vunpack.c.l.bf16 %v437
        %v470 = vunpack.c.l.bf16 %v438
        %v471 = vunpack.c.l.bf16 %v439
        %v472 = vld [vmem:[%s1] sm:$0x7]
        %474 = vset.pattern.permute.xlu0 0
        %475 = vperm.xlu0 %474, %v440
        %v476 = vpop.permute.xlu0 %475
        %479 = vset.pattern.permute.xlu0 0
        %480 = vperm.xlu0 %479, %v441
        %v481 = vpop.permute.xlu0 %480
        %484 = vset.pattern.permute.xlu0 0
        %485 = vperm.xlu0 %484, %v442
        %v486 = vpop.permute.xlu0 %485
        %489 = vset.pattern.permute.xlu0 0
        %490 = vperm.xlu0 %489, %v443
        %v491 = vpop.permute.xlu0 %490
        %494 = vset.pattern.permute.xlu0 0
        %495 = vperm.xlu0 %494, %v444
        %v496 = vpop.permute.xlu0 %495
        %499 = vset.pattern.permute.xlu0 0
        %500 = vperm.xlu0 %499, %v445
        %v501 = vpop.permute.xlu0 %500
        %504 = vset.pattern.permute.xlu0 0
        %505 = vperm.xlu0 %504, %v446
        %v506 = vpop.permute.xlu0 %505
        %509 = vset.pattern.permute.xlu0 0
        %510 = vperm.xlu0 %509, %v447
        %v511 = vpop.permute.xlu0 %510
        %514 = vset.pattern.permute.xlu0 0
        %515 = vperm.xlu0 %514, %v448
        %v516 = vpop.permute.xlu0 %515
        %519 = vset.pattern.permute.xlu0 0
        %520 = vperm.xlu0 %519, %v449
        %v521 = vpop.permute.xlu0 %520
        %524 = vset.pattern.permute.xlu0 0
        %525 = vperm.xlu0 %524, %v450
        %v526 = vpop.permute.xlu0 %525
        %529 = vset.pattern.permute.xlu0 0
        %530 = vperm.xlu0 %529, %v451
        %v531 = vpop.permute.xlu0 %530
        %534 = vset.pattern.permute.xlu0 0
        %535 = vperm.xlu0 %534, %v452
        %v536 = vpop.permute.xlu0 %535
        %539 = vset.pattern.permute.xlu0 0
        %540 = vperm.xlu0 %539, %v453
        %v541 = vpop.permute.xlu0 %540
        %544 = vset.pattern.permute.xlu0 0
        %545 = vperm.xlu0 %544, %v454
        %v546 = vpop.permute.xlu0 %545
        %549 = vset.pattern.permute.xlu0 0
        %550 = vperm.xlu0 %549, %v455
        %v551 = vpop.permute.xlu0 %550
        %554 = vset.pattern.permute.xlu0 0
        %555 = vperm.xlu0 %554, %v456
        %v556 = vpop.permute.xlu0 %555
        %559 = vset.pattern.permute.xlu0 0
        %560 = vperm.xlu0 %559, %v457
        %v561 = vpop.permute.xlu0 %560
        %564 = vset.pattern.permute.xlu0 0
        %565 = vperm.xlu0 %564, %v458
        %v566 = vpop.permute.xlu0 %565
        %569 = vset.pattern.permute.xlu0 0
        %570 = vperm.xlu0 %569, %v459
        %v571 = vpop.permute.xlu0 %570
        %574 = vset.pattern.permute.xlu0 0
        %575 = vperm.xlu0 %574, %v460
        %v576 = vpop.permute.xlu0 %575
        %579 = vset.pattern.permute.xlu0 0
        %580 = vperm.xlu0 %579, %v461
        %v581 = vpop.permute.xlu0 %580
        %584 = vset.pattern.permute.xlu0 0
        %585 = vperm.xlu0 %584, %v462
        %v586 = vpop.permute.xlu0 %585
        %589 = vset.pattern.permute.xlu0 0
        %590 = vperm.xlu0 %589, %v463
        %v591 = vpop.permute.xlu0 %590
        %594 = vset.pattern.permute.xlu0 0
        %595 = vperm.xlu0 %594, %v464
        %v596 = vpop.permute.xlu0 %595
        %599 = vset.pattern.permute.xlu0 0
        %600 = vperm.xlu0 %599, %v465
        %v601 = vpop.permute.xlu0 %600
        %604 = vset.pattern.permute.xlu0 0
        %605 = vperm.xlu0 %604, %v466
        %v606 = vpop.permute.xlu0 %605
        %609 = vset.pattern.permute.xlu0 0
        %610 = vperm.xlu0 %609, %v467
        %v611 = vpop.permute.xlu0 %610
        %614 = vset.pattern.permute.xlu0 0
        %615 = vperm.xlu0 %614, %v468
        %v616 = vpop.permute.xlu0 %615
        %619 = vset.pattern.permute.xlu0 0
        %620 = vperm.xlu0 %619, %v469
        %v621 = vpop.permute.xlu0 %620
        %624 = vset.pattern.permute.xlu0 0
        %625 = vperm.xlu0 %624, %v470
        %v626 = vpop.permute.xlu0 %625
        %629 = vset.pattern.permute.xlu0 0
        %630 = vperm.xlu0 %629, %v471
        %v631 = vpop.permute.xlu0 %630
        %v633 = vlaneseq
        %v634 = vshrl.u32 %v633, 7
        %v635 = vsub.s32 0, %v634
        %v636 = vrot.slane %v472, %v635
        %v637 = vmul.f32 %v476, %v636
        %v638 = vmul.f32 %v481, %v636
        %v639 = vmul.f32 %v486, %v636
        %v640 = vmul.f32 %v491, %v636
        %v641 = vmul.f32 %v496, %v636
        %v642 = vmul.f32 %v501, %v636
        %v643 = vmul.f32 %v506, %v636
        %v644 = vmul.f32 %v511, %v636
        %v645 = vmul.f32 %v516, %v636
        %v646 = vmul.f32 %v521, %v636
        %v647 = vmul.f32 %v526, %v636
        %v648 = vmul.f32 %v531, %v636
        %v649 = vmul.f32 %v536, %v636
        %v650 = vmul.f32 %v541, %v636
        %v651 = vmul.f32 %v546, %v636
        %v652 = vmul.f32 %v551, %v636
        %v653 = vmul.f32 %v556, %v636
        %v654 = vmul.f32 %v561, %v636
        %v655 = vmul.f32 %v566, %v636
        %v656 = vmul.f32 %v571, %v636
        %v657 = vmul.f32 %v576, %v636
        %v658 = vmul.f32 %v581, %v636
        %v659 = vmul.f32 %v586, %v636
        %v660 = vmul.f32 %v591, %v636
        %v661 = vmul.f32 %v596, %v636
        %v662 = vmul.f32 %v601, %v636
        %v663 = vmul.f32 %v606, %v636
        %v664 = vmul.f32 %v611, %v636
        %v665 = vmul.f32 %v616, %v636
        %v666 = vmul.f32 %v621, %v636
        %v667 = vmul.f32 %v626, %v636
        %v668 = vmul.f32 %v631, %v636
        %669 = vset.pattern.permute.xlu0 1
        %670 = vperm.xlu0 %669, %v440
        %v671 = vpop.permute.xlu0 %670
        %673 = vset.pattern.permute.xlu0 1
        %674 = vperm.xlu0 %673, %v441
        %v675 = vpop.permute.xlu0 %674
        %677 = vset.pattern.permute.xlu0 1
        %678 = vperm.xlu0 %677, %v442
        %v679 = vpop.permute.xlu0 %678
        %681 = vset.pattern.permute.xlu0 1
        %682 = vperm.xlu0 %681, %v443
        %v683 = vpop.permute.xlu0 %682
        %685 = vset.pattern.permute.xlu0 1
        %686 = vperm.xlu0 %685, %v444
        %v687 = vpop.permute.xlu0 %686
        %689 = vset.pattern.permute.xlu0 1
        %690 = vperm.xlu0 %689, %v445
        %v691 = vpop.permute.xlu0 %690
        %693 = vset.pattern.permute.xlu0 1
        %694 = vperm.xlu0 %693, %v446
        %v695 = vpop.permute.xlu0 %694
        %697 = vset.pattern.permute.xlu0 1
        %698 = vperm.xlu0 %697, %v447
        %v699 = vpop.permute.xlu0 %698
        %701 = vset.pattern.permute.xlu0 1
        %702 = vperm.xlu0 %701, %v448
        %v703 = vpop.permute.xlu0 %702
        %705 = vset.pattern.permute.xlu0 1
        %706 = vperm.xlu0 %705, %v449
        %v707 = vpop.permute.xlu0 %706
        %709 = vset.pattern.permute.xlu0 1
        %710 = vperm.xlu0 %709, %v450
        %v711 = vpop.permute.xlu0 %710
        %713 = vset.pattern.permute.xlu0 1
        %714 = vperm.xlu0 %713, %v451
        %v715 = vpop.permute.xlu0 %714
        %717 = vset.pattern.permute.xlu0 1
        %718 = vperm.xlu0 %717, %v452
        %v719 = vpop.permute.xlu0 %718
        %721 = vset.pattern.permute.xlu0 1
        %722 = vperm.xlu0 %721, %v453
        %v723 = vpop.permute.xlu0 %722
        %725 = vset.pattern.permute.xlu0 1
        %726 = vperm.xlu0 %725, %v454
        %v727 = vpop.permute.xlu0 %726
        %729 = vset.pattern.permute.xlu0 1
        %730 = vperm.xlu0 %729, %v455
        %v731 = vpop.permute.xlu0 %730
        %733 = vset.pattern.permute.xlu0 1
        %734 = vperm.xlu0 %733, %v456
        %v735 = vpop.permute.xlu0 %734
        %737 = vset.pattern.permute.xlu0 1
        %738 = vperm.xlu0 %737, %v457
        %v739 = vpop.permute.xlu0 %738
        %741 = vset.pattern.permute.xlu0 1
        %742 = vperm.xlu0 %741, %v458
        %v743 = vpop.permute.xlu0 %742
        %745 = vset.pattern.permute.xlu0 1
        %746 = vperm.xlu0 %745, %v459
        %v747 = vpop.permute.xlu0 %746
        %749 = vset.pattern.permute.xlu0 1
        %750 = vperm.xlu0 %749, %v460
        %v751 = vpop.permute.xlu0 %750
        %753 = vset.pattern.permute.xlu0 1
        %754 = vperm.xlu0 %753, %v461
        %v755 = vpop.permute.xlu0 %754
        %757 = vset.pattern.permute.xlu0 1
        %758 = vperm.xlu0 %757, %v462
        %v759 = vpop.permute.xlu0 %758
        %761 = vset.pattern.permute.xlu0 1
        %762 = vperm.xlu0 %761, %v463
        %v763 = vpop.permute.xlu0 %762
        %765 = vset.pattern.permute.xlu0 1
        %766 = vperm.xlu0 %765, %v464
        %v767 = vpop.permute.xlu0 %766
        %769 = vset.pattern.permute.xlu0 1
        %770 = vperm.xlu0 %769, %v465
        %v771 = vpop.permute.xlu0 %770
        %773 = vset.pattern.permute.xlu0 1
        %774 = vperm.xlu0 %773, %v466
        %v775 = vpop.permute.xlu0 %774
        %777 = vset.pattern.permute.xlu0 1
        %778 = vperm.xlu0 %777, %v467
        %v779 = vpop.permute.xlu0 %778
        %781 = vset.pattern.permute.xlu0 1
        %782 = vperm.xlu0 %781, %v468
        %v783 = vpop.permute.xlu0 %782
        %785 = vset.pattern.permute.xlu0 1
        %786 = vperm.xlu0 %785, %v469
        %v787 = vpop.permute.xlu0 %786
        %789 = vset.pattern.permute.xlu0 1
        %790 = vperm.xlu0 %789, %v470
        %v791 = vpop.permute.xlu0 %790
        %793 = vset.pattern.permute.xlu0 1
        %794 = vperm.xlu0 %793, %v471
        %v795 = vpop.permute.xlu0 %794
        %v797 = vlaneseq
        %v798 = vshrl.u32 %v797, 7
        %v799 = vsub.s32 1, %v798
        %v800 = vrot.slane %v472, %v799
        %v801 = vmul.f32 %v671, %v800
        %v802 = vmul.f32 %v675, %v800
        %v803 = vmul.f32 %v679, %v800
        %v804 = vmul.f32 %v683, %v800
        %v805 = vmul.f32 %v687, %v800
        %v806 = vmul.f32 %v691, %v800
        %v807 = vmul.f32 %v695, %v800
        %v808 = vmul.f32 %v699, %v800
        %v809 = vmul.f32 %v703, %v800
        %v810 = vmul.f32 %v707, %v800
        %v811 = vmul.f32 %v711, %v800
        %v812 = vmul.f32 %v715, %v800
        %v813 = vmul.f32 %v719, %v800
        %v814 = vmul.f32 %v723, %v800
        %v815 = vmul.f32 %v727, %v800
        %v816 = vmul.f32 %v731, %v800
        %v817 = vmul.f32 %v735, %v800
        %v818 = vmul.f32 %v739, %v800
        %v819 = vmul.f32 %v743, %v800
        %v820 = vmul.f32 %v747, %v800
        %v821 = vmul.f32 %v751, %v800
        %v822 = vmul.f32 %v755, %v800
        %v823 = vmul.f32 %v759, %v800
        %v824 = vmul.f32 %v763, %v800
        %v825 = vmul.f32 %v767, %v800
        %v826 = vmul.f32 %v771, %v800
        %v827 = vmul.f32 %v775, %v800
        %v828 = vmul.f32 %v779, %v800
        %v829 = vmul.f32 %v783, %v800
        %v830 = vmul.f32 %v787, %v800
        %v831 = vmul.f32 %v791, %v800
        %v832 = vmul.f32 %v795, %v800
        %v833 = vadd.f32 %v637, %v801
        %v834 = vadd.f32 %v638, %v802
        %v835 = vadd.f32 %v639, %v803
        %v836 = vadd.f32 %v640, %v804
        %v837 = vadd.f32 %v641, %v805
        %v838 = vadd.f32 %v642, %v806
        %v839 = vadd.f32 %v643, %v807
        %v840 = vadd.f32 %v644, %v808
        %v841 = vadd.f32 %v645, %v809
        %v842 = vadd.f32 %v646, %v810
        %v843 = vadd.f32 %v647, %v811
        %v844 = vadd.f32 %v648, %v812
        %v845 = vadd.f32 %v649, %v813
        %v846 = vadd.f32 %v650, %v814
        %v847 = vadd.f32 %v651, %v815
        %v848 = vadd.f32 %v652, %v816
        %v849 = vadd.f32 %v653, %v817
        %v850 = vadd.f32 %v654, %v818
        %v851 = vadd.f32 %v655, %v819
        %v852 = vadd.f32 %v656, %v820
        %v853 = vadd.f32 %v657, %v821
        %v854 = vadd.f32 %v658, %v822
        %v855 = vadd.f32 %v659, %v823
        %v856 = vadd.f32 %v660, %v824
        %v857 = vadd.f32 %v661, %v825
        %v858 = vadd.f32 %v662, %v826
        %v859 = vadd.f32 %v663, %v827
        %v860 = vadd.f32 %v664, %v828
        %v861 = vadd.f32 %v665, %v829
        %v862 = vadd.f32 %v666, %v830
        %v863 = vadd.f32 %v667, %v831
        %v864 = vadd.f32 %v668, %v832
        %865 = vset.pattern.permute.xlu0 2
        %866 = vperm.xlu0 %865, %v440
        %v867 = vpop.permute.xlu0 %866
        %869 = vset.pattern.permute.xlu0 2
        %870 = vperm.xlu0 %869, %v441
        %v871 = vpop.permute.xlu0 %870
        %873 = vset.pattern.permute.xlu0 2
        %874 = vperm.xlu0 %873, %v442
        %v875 = vpop.permute.xlu0 %874
        %877 = vset.pattern.permute.xlu0 2
        %878 = vperm.xlu0 %877, %v443
        %v879 = vpop.permute.xlu0 %878
        %881 = vset.pattern.permute.xlu0 2
        %882 = vperm.xlu0 %881, %v444
        %v883 = vpop.permute.xlu0 %882
        %885 = vset.pattern.permute.xlu0 2
        %886 = vperm.xlu0 %885, %v445
        %v887 = vpop.permute.xlu0 %886
        %889 = vset.pattern.permute.xlu0 2
        %890 = vperm.xlu0 %889, %v446
        %v891 = vpop.permute.xlu0 %890
        %893 = vset.pattern.permute.xlu0 2
        %894 = vperm.xlu0 %893, %v447
        %v895 = vpop.permute.xlu0 %894
        %897 = vset.pattern.permute.xlu0 2
        %898 = vperm.xlu0 %897, %v448
        %v899 = vpop.permute.xlu0 %898
        %901 = vset.pattern.permute.xlu0 2
        %902 = vperm.xlu0 %901, %v449
        %v903 = vpop.permute.xlu0 %902
        %905 = vset.pattern.permute.xlu0 2
        %906 = vperm.xlu0 %905, %v450
        %v907 = vpop.permute.xlu0 %906
        %909 = vset.pattern.permute.xlu0 2
        %910 = vperm.xlu0 %909, %v451
        %v911 = vpop.permute.xlu0 %910
        %913 = vset.pattern.permute.xlu0 2
        %914 = vperm.xlu0 %913, %v452
        %v915 = vpop.permute.xlu0 %914
        %917 = vset.pattern.permute.xlu0 2
        %918 = vperm.xlu0 %917, %v453
        %v919 = vpop.permute.xlu0 %918
        %921 = vset.pattern.permute.xlu0 2
        %922 = vperm.xlu0 %921, %v454
        %v923 = vpop.permute.xlu0 %922
        %925 = vset.pattern.permute.xlu0 2
        %926 = vperm.xlu0 %925, %v455
        %v927 = vpop.permute.xlu0 %926
        %929 = vset.pattern.permute.xlu0 2
        %930 = vperm.xlu0 %929, %v456
        %v931 = vpop.permute.xlu0 %930
        %933 = vset.pattern.permute.xlu0 2
        %934 = vperm.xlu0 %933, %v457
        %v935 = vpop.permute.xlu0 %934
        %937 = vset.pattern.permute.xlu0 2
        %938 = vperm.xlu0 %937, %v458
        %v939 = vpop.permute.xlu0 %938
        %941 = vset.pattern.permute.xlu0 2
        %942 = vperm.xlu0 %941, %v459
        %v943 = vpop.permute.xlu0 %942
        %945 = vset.pattern.permute.xlu0 2
        %946 = vperm.xlu0 %945, %v460
        %v947 = vpop.permute.xlu0 %946
        %949 = vset.pattern.permute.xlu0 2
        %950 = vperm.xlu0 %949, %v461
        %v951 = vpop.permute.xlu0 %950
        %953 = vset.pattern.permute.xlu0 2
        %954 = vperm.xlu0 %953, %v462
        %v955 = vpop.permute.xlu0 %954
        %957 = vset.pattern.permute.xlu0 2
        %958 = vperm.xlu0 %957, %v463
        %v959 = vpop.permute.xlu0 %958
        %961 = vset.pattern.permute.xlu0 2
        %962 = vperm.xlu0 %961, %v464
        %v963 = vpop.permute.xlu0 %962
        %965 = vset.pattern.permute.xlu0 2
        %966 = vperm.xlu0 %965, %v465
        %v967 = vpop.permute.xlu0 %966
        %969 = vset.pattern.permute.xlu0 2
        %970 = vperm.xlu0 %969, %v466
        %v971 = vpop.permute.xlu0 %970
        %973 = vset.pattern.permute.xlu0 2
        %974 = vperm.xlu0 %973, %v467
        %v975 = vpop.permute.xlu0 %974
        %977 = vset.pattern.permute.xlu0 2
        %978 = vperm.xlu0 %977, %v468
        %v979 = vpop.permute.xlu0 %978
        %981 = vset.pattern.permute.xlu0 2
        %982 = vperm.xlu0 %981, %v469
        %v983 = vpop.permute.xlu0 %982
        %985 = vset.pattern.permute.xlu0 2
        %986 = vperm.xlu0 %985, %v470
        %v987 = vpop.permute.xlu0 %986
        %989 = vset.pattern.permute.xlu0 2
        %990 = vperm.xlu0 %989, %v471
        %v991 = vpop.permute.xlu0 %990
        %v993 = vlaneseq
        %v994 = vshrl.u32 %v993, 7
        %v995 = vsub.s32 2, %v994
        %v996 = vrot.slane %v472, %v995
        %v997 = vmul.f32 %v867, %v996
        %v998 = vmul.f32 %v871, %v996
        %v999 = vmul.f32 %v875, %v996
        %v1000 = vmul.f32 %v879, %v996
        %v1001 = vmul.f32 %v883, %v996
        %v1002 = vmul.f32 %v887, %v996
        %v1003 = vmul.f32 %v891, %v996
        %v1004 = vmul.f32 %v895, %v996
        %v1005 = vmul.f32 %v899, %v996
        %v1006 = vmul.f32 %v903, %v996
        %v1007 = vmul.f32 %v907, %v996
        %v1008 = vmul.f32 %v911, %v996
        %v1009 = vmul.f32 %v915, %v996
        %v1010 = vmul.f32 %v919, %v996
        %v1011 = vmul.f32 %v923, %v996
        %v1012 = vmul.f32 %v927, %v996
        %v1013 = vmul.f32 %v931, %v996
        %v1014 = vmul.f32 %v935, %v996
        %v1015 = vmul.f32 %v939, %v996
        %v1016 = vmul.f32 %v943, %v996
        %v1017 = vmul.f32 %v947, %v996
        %v1018 = vmul.f32 %v951, %v996
        %v1019 = vmul.f32 %v955, %v996
        %v1020 = vmul.f32 %v959, %v996
        %v1021 = vmul.f32 %v963, %v996
        %v1022 = vmul.f32 %v967, %v996
        %v1023 = vmul.f32 %v971, %v996
        %v1024 = vmul.f32 %v975, %v996
        %v1025 = vmul.f32 %v979, %v996
        %v1026 = vmul.f32 %v983, %v996
        %v1027 = vmul.f32 %v987, %v996
        %v1028 = vmul.f32 %v991, %v996
        %v1029 = vadd.f32 %v833, %v997
        %v1030 = vadd.f32 %v834, %v998
        %v1031 = vadd.f32 %v835, %v999
        %v1032 = vadd.f32 %v836, %v1000
        %v1033 = vadd.f32 %v837, %v1001
        %v1034 = vadd.f32 %v838, %v1002
        %v1035 = vadd.f32 %v839, %v1003
        %v1036 = vadd.f32 %v840, %v1004
        %v1037 = vadd.f32 %v841, %v1005
        %v1038 = vadd.f32 %v842, %v1006
        %v1039 = vadd.f32 %v843, %v1007
        %v1040 = vadd.f32 %v844, %v1008
        %v1041 = vadd.f32 %v845, %v1009
        %v1042 = vadd.f32 %v846, %v1010
        %v1043 = vadd.f32 %v847, %v1011
        %v1044 = vadd.f32 %v848, %v1012
        %v1045 = vadd.f32 %v849, %v1013
        %v1046 = vadd.f32 %v850, %v1014
        %v1047 = vadd.f32 %v851, %v1015
        %v1048 = vadd.f32 %v852, %v1016
        %v1049 = vadd.f32 %v853, %v1017
        %v1050 = vadd.f32 %v854, %v1018
        %v1051 = vadd.f32 %v855, %v1019
        %v1052 = vadd.f32 %v856, %v1020
        %v1053 = vadd.f32 %v857, %v1021
        %v1054 = vadd.f32 %v858, %v1022
        %v1055 = vadd.f32 %v859, %v1023
        %v1056 = vadd.f32 %v860, %v1024
        %v1057 = vadd.f32 %v861, %v1025
        %v1058 = vadd.f32 %v862, %v1026
        %v1059 = vadd.f32 %v863, %v1027
        %v1060 = vadd.f32 %v864, %v1028
        %v1061 = vld [vmem:[%s2] sm:$0x1]
        %v1063 = vlaneseq
        %v1064 = vshrl.u32 %v1063, 7
        %v1065 = vsub.s32 0, %v1064
        %v1066 = vrot.slane %v1061, %v1065
        %v1068 = vadd.f32 %v1029, %v1066
        %v1069 = vadd.f32 %v1030, %v1066
        %v1070 = vadd.f32 %v1031, %v1066
        %v1071 = vadd.f32 %v1032, %v1066
        %v1072 = vadd.f32 %v1033, %v1066
        %v1073 = vadd.f32 %v1034, %v1066
        %v1074 = vadd.f32 %v1035, %v1066
        %v1075 = vadd.f32 %v1036, %v1066
        %v1076 = vadd.f32 %v1037, %v1066
        %v1077 = vadd.f32 %v1038, %v1066
        %v1078 = vadd.f32 %v1039, %v1066
        %v1079 = vadd.f32 %v1040, %v1066
        %v1080 = vadd.f32 %v1041, %v1066
        %v1081 = vadd.f32 %v1042, %v1066
        %v1082 = vadd.f32 %v1043, %v1066
        %v1083 = vadd.f32 %v1044, %v1066
        %v1084 = vadd.f32 %v1045, %v1066
        %v1085 = vadd.f32 %v1046, %v1066
        %v1086 = vadd.f32 %v1047, %v1066
        %v1087 = vadd.f32 %v1048, %v1066
        %v1088 = vadd.f32 %v1049, %v1066
        %v1089 = vadd.f32 %v1050, %v1066
        %v1090 = vadd.f32 %v1051, %v1066
        %v1091 = vadd.f32 %v1052, %v1066
        %v1092 = vadd.f32 %v1053, %v1066
        %v1093 = vadd.f32 %v1054, %v1066
        %v1094 = vadd.f32 %v1055, %v1066
        %v1095 = vadd.f32 %v1056, %v1066
        %v1096 = vadd.f32 %v1057, %v1066
        %v1097 = vadd.f32 %v1058, %v1066
        %v1098 = vadd.f32 %v1059, %v1066
        %v1099 = vadd.f32 %v1060, %v1066
        %v1100 = vmax.f32 %v1068, 0.0
        %v1101 = vmax.f32 %v1069, 0.0
        %v1102 = vmax.f32 %v1070, 0.0
        %v1103 = vmax.f32 %v1071, 0.0
        %v1104 = vmax.f32 %v1072, 0.0
        %v1105 = vmax.f32 %v1073, 0.0
        %v1106 = vmax.f32 %v1074, 0.0
        %v1107 = vmax.f32 %v1075, 0.0
        %v1108 = vmax.f32 %v1076, 0.0
        %v1109 = vmax.f32 %v1077, 0.0
        %v1110 = vmax.f32 %v1078, 0.0
        %v1111 = vmax.f32 %v1079, 0.0
        %v1112 = vmax.f32 %v1080, 0.0
        %v1113 = vmax.f32 %v1081, 0.0
        %v1114 = vmax.f32 %v1082, 0.0
        %v1115 = vmax.f32 %v1083, 0.0
        %v1116 = vmax.f32 %v1084, 0.0
        %v1117 = vmax.f32 %v1085, 0.0
        %v1118 = vmax.f32 %v1086, 0.0
        %v1119 = vmax.f32 %v1087, 0.0
        %v1120 = vmax.f32 %v1088, 0.0
        %v1121 = vmax.f32 %v1089, 0.0
        %v1122 = vmax.f32 %v1090, 0.0
        %v1123 = vmax.f32 %v1091, 0.0
        %v1124 = vmax.f32 %v1092, 0.0
        %v1125 = vmax.f32 %v1093, 0.0
        %v1126 = vmax.f32 %v1094, 0.0
        %v1127 = vmax.f32 %v1095, 0.0
        %v1128 = vmax.f32 %v1096, 0.0
        %v1129 = vmax.f32 %v1097, 0.0
        %v1130 = vmax.f32 %v1098, 0.0
        %v1131 = vmax.f32 %v1099, 0.0
        %v1132 = vld [vmem:[#allocation2] sm:$0x3]
        %v1133 = vadd.f32 %v1100, %v1101
        %v1134 = vadd.f32 %v1133, %v1102
        %v1135 = vadd.f32 %v1134, %v1103
        %v1136 = vadd.f32 %v1135, %v1104
        %v1137 = vadd.f32 %v1136, %v1105
        %v1138 = vadd.f32 %v1137, %v1106
        %v1139 = vadd.f32 %v1138, %v1107
        %v1140 = vadd.f32 %v1139, %v1108
        %v1141 = vadd.f32 %v1140, %v1109
        %v1142 = vadd.f32 %v1141, %v1110
        %v1143 = vadd.f32 %v1142, %v1111
        %v1144 = vadd.f32 %v1143, %v1112
        %v1145 = vadd.f32 %v1144, %v1113
        %v1146 = vadd.f32 %v1145, %v1114
        %v1147 = vadd.f32 %v1146, %v1115
        %v1148 = vrot.slane %v1147, 4
        %v1149 = vadd.f32 %v1147, %v1148
        %v1150 = vrot.slane %v1149, 2
        %v1151 = vadd.f32 %v1149, %v1150
        %v1152 = vrot.slane %v1151, 1
        %v1153 = vadd.f32 %v1151, %v1152
        %v1154 = vadd.f32 %v1116, %v1117
        %v1155 = vadd.f32 %v1154, %v1118
        %v1156 = vadd.f32 %v1155, %v1119
        %v1157 = vadd.f32 %v1156, %v1120
        %v1158 = vadd.f32 %v1157, %v1121
        %v1159 = vadd.f32 %v1158, %v1122
        %v1160 = vadd.f32 %v1159, %v1123
        %v1161 = vadd.f32 %v1160, %v1124
        %v1162 = vadd.f32 %v1161, %v1125
        %v1163 = vadd.f32 %v1162, %v1126
        %v1164 = vadd.f32 %v1163, %v1127
        %v1165 = vadd.f32 %v1164, %v1128
        %v1166 = vadd.f32 %v1165, %v1129
        %v1167 = vadd.f32 %v1166, %v1130
        %v1168 = vadd.f32 %v1167, %v1131
        %v1169 = vrot.slane %v1168, 4
        %v1170 = vadd.f32 %v1168, %v1169
        %v1171 = vrot.slane %v1170, 2
        %v1172 = vadd.f32 %v1170, %v1171
        %v1173 = vrot.slane %v1172, 1
        %v1174 = vadd.f32 %v1172, %v1173
        %vm1177 = vcmask 1041409
        %v1178 = vsel %vm1177, %v1174, %v1153
        %v1180 = vadd.f32 %v1132, %v1178
        %1181 = vst [vmem:[#allocation2] sm:$0x3] %v1180
        %p1182 = scmp.eq.s32.totalorder %s22, 1
        // Predicated region
        $region86: #{tpu_custom_call.1} parent=76 // pred_check
          %p1183 = pneg %p1182
        $region87: #{tpu_custom_call.1} parent=76 // pred_check_branch
          %1185 = sbr.rel (%p1183) target = $region89
        $region88: #{tpu_custom_call.1} parent=76 // pred_region
          %v1186 = vld [vmem:[#allocation2] sm:$0x3]
          %v1187 = vmul.f32 %v1186, 0.00390625
          %v1188 = vld [vmem:[%s3] sm:$0xff]
          %v1189 = vld [vmem:[%s3 + $0x8] sm:$0xff]
          %v1190 = vld [vmem:[%s3 + $0x10] sm:$0xff]
          %v1191 = vld [vmem:[%s3 + $0x18] sm:$0xff]
          %v1192 = vld [vmem:[%s3 + $0x20] sm:$0xff]
          %v1193 = vld [vmem:[%s3 + $0x28] sm:$0xff]
          %v1194 = vld [vmem:[%s3 + $0x30] sm:$0xff]
          %v1195 = vld [vmem:[%s3 + $0x38] sm:$0xff]
          %v1196 = vld [vmem:[%s3 + $0x40] sm:$0xff]
          %v1197 = vld [vmem:[%s3 + $0x48] sm:$0xff]
          %v1198 = vld [vmem:[%s3 + $0x50] sm:$0xff]
          %v1199 = vld [vmem:[%s3 + $0x58] sm:$0xff]
          %v1200 = vld [vmem:[%s3 + $0x60] sm:$0xff]
          %v1201 = vld [vmem:[%s3 + $0x68] sm:$0xff]
          %v1202 = vld [vmem:[%s3 + $0x70] sm:$0xff]
          %v1203 = vld [vmem:[%s3 + $0x78] sm:$0xff]
          %v1204 = vld [vmem:[%s4] sm:$0x1]
          %v1206 = vlaneseq
          %v1207 = vshrl.u32 %v1206, 7
          %v1208 = vsub.s32 0, %v1207
          %v1209 = vrot.slane %v1204, %v1208
          %1211 = vmatprep.subr.mxu0 0.0
          %1212 = vmatpush1.msra.mxu0 %v1203
          %1213 = vmatprep.subr.mxu0 0.0
          %1214 = vmatpush1.msra.mxu0 %v1202
          %1215 = vmatprep.subr.mxu0 0.0
          %1216 = vmatpush1.msra.mxu0 %v1201
          %1217 = vmatprep.subr.mxu0 0.0
          %1218 = vmatpush1.msra.mxu0 %v1200
          %1219 = vmatprep.subr.mxu0 0.0
          %1220 = vmatpush1.msra.mxu0 %v1199
          %1221 = vmatprep.subr.mxu0 0.0
          %1222 = vmatpush1.msra.mxu0 %v1198
          %1223 = vmatprep.subr.mxu0 0.0
          %1224 = vmatpush1.msra.mxu0 %v1197
          %1225 = vmatprep.subr.mxu0 0.0
          %1226 = vmatpush1.msra.mxu0 %v1196
          %1227 = vmatprep.subr.mxu0 0.0
          %1228 = vmatpush1.msra.mxu0 %v1195
          %1229 = vmatprep.subr.mxu0 0.0
          %1230 = vmatpush1.msra.mxu0 %v1194
          %1231 = vmatprep.subr.mxu0 0.0
          %1232 = vmatpush1.msra.mxu0 %v1193
          %1233 = vmatprep.subr.mxu0 0.0
          %1234 = vmatpush1.msra.mxu0 %v1192
          %1235 = vmatprep.subr.mxu0 0.0
          %1236 = vmatpush1.msra.mxu0 %v1191
          %1237 = vmatprep.subr.mxu0 0.0
          %1238 = vmatpush1.msra.mxu0 %v1190
          %1239 = vmatprep.subr.mxu0 0.0
          %1240 = vmatpush1.msra.mxu0 %v1189
          %1241 = vmatprep.subr.mxu0 0.0
          %1242 = vmatpush1.msra.mxu0 %v1188
          %1243 = vmatprep.subr.mxu0 0.0
          %1244 = vmatpush2.msra.mxu0 0.0
          %1245 = vmatprep.subr.mxu0 0.0
          %1246 = vmatpush2.msra.mxu0 0.0
          %1247 = vmatprep.subr.mxu0 0.0
          %1248 = vmatpush2.msra.mxu0 0.0
          %1249 = vmatprep.subr.mxu0 0.0
          %1250 = vmatpush2.msra.mxu0 0.0
          %1251 = vmatprep.subr.mxu0 0.0
          %1252 = vmatpush2.msra.mxu0 0.0
          %1253 = vmatprep.subr.mxu0 0.0
          %1254 = vmatpush2.msra.mxu0 0.0
          %1255 = vmatprep.subr.mxu0 0.0
          %1256 = vmatpush2.msra.mxu0 0.0
          %1257 = vmatprep.subr.mxu0 0.0
          %1258 = vmatpush2.msra.mxu0 0.0
          %1259 = vmatprep.subr.mxu0 0.0
          %1260 = vmatpush2.msra.mxu0 0.0
          %1261 = vmatprep.subr.mxu0 0.0
          %1262 = vmatpush2.msra.mxu0 0.0
          %1263 = vmatprep.subr.mxu0 0.0
          %1264 = vmatpush2.msra.mxu0 0.0
          %1265 = vmatprep.subr.mxu0 0.0
          %1266 = vmatpush2.msra.mxu0 0.0
          %1267 = vmatprep.subr.mxu0 0.0
          %1268 = vmatpush2.msra.mxu0 0.0
          %1269 = vmatprep.subr.mxu0 0.0
          %1270 = vmatpush2.msra.mxu0 0.0
          %1271 = vmatprep.subr.mxu0 0.0
          %1272 = vmatpush2.msra.mxu0 0.0
          %1273 = vmatprep.subr.mxu0 0.0
          %1274 = vmatpush2.msra.mxu0 0.0
          %1275 = vmatprep.mubr.f32.mxu0 0.0
          %1276 = vmatmul.mubr.f32.gmra.mxu0 %v1187
          %v1277 = vpop.f32.mrf.mxu0
          %v1278 = vadd.f32 %v1209, %v1277
          %v1279 = vpop.f32.mrf.mxu0
          %1280 = vdwg.mxu0
          %1281 = vst [vmem:[#allocation4] sm:$0x3] %v1278
        $region89: #{tpu_custom_call.1} parent=76 // pred_fallthru
          _
        // Predicated region
        $region90: #{tpu_custom_call.1} parent=76 // pred_check
          %p1282 = pneg %p159
        $region91: #{tpu_custom_call.1} parent=76 // pred_check_branch
          %1284 = sbr.rel (%p1282) target = $region93
        $region92: #{tpu_custom_call.1} parent=76 // pred_region
          %s1286 = ssub.s32 32, 32
          %1287 = vsyncadd [#allocation5], %s1286
          %s1288 = smul.addr %s21, 32
          %s1289 = scalar_lea.hbm %s5, %s1288
          %s1291 = sshll.u32 [#allocation4], 4
          %s1292 = int_to_ptr.vmem [resolvable:$true] %s1291
          %1294 = dma.vmem_to_hbm [thread:$0]  %s1292, 32, %s1289, [#allocation5]
        $region93: #{tpu_custom_call.1} parent=76 // pred_fallthru
          _
        // Predicated region
        $region94: #{tpu_custom_call.1} parent=76 // pred_check
          %p1295 = pneg %p159
        $region95: #{tpu_custom_call.1} parent=76 // pred_check_branch
          %1297 = sbr.rel (%p1295) target = $region97
        $region96: #{tpu_custom_call.1} parent=76 // pred_region
          %1298 = dma.done [#allocation5], 32
        $region97: #{tpu_custom_call.1} parent=76 // pred_fallthru
          _
      $region77: #{tpu_custom_call.1} parent=5 // pred_fallthru
        _
      %p1299 = scmp.le.s32.totalorder 2, %s12
      // Predicated region
      $region98: #{tpu_custom_call.1} parent=5 // pred_check
        %p1300 = pneg %p1299
      $region99: #{tpu_custom_call.1} parent=5 // pred_check_branch
        %1302 = sbr.rel (%p1300) target = $region101
      $region100: #{tpu_custom_call.1} parent=5 // pred_region
        %s1303 = ssub.s32 %s12, 2
      $region101: #{tpu_custom_call.1} parent=5 // pred_fallthru
        _
    $region6: #{tpu_custom_call.1} parent=1 // loop_footer
      %s16 = sadd.s32 1, %s12
    $region7: #{tpu_custom_call.1} parent=1 // loop_footer_branch
      %11 = sbr.rel target = $region3
    $region8: #{tpu_custom_call.1} parent=1 // loop_exit
      _
    %1304 = vsyncpa [#allocation5], 1
    %s1305 = scalar_lea.sflag [#allocation5], 1
    %1306 = vsyncpa %s1305, 1

</llo_original>
